<compile_context>
chip_gen: v7x
topology: tpu7x:2x2x1
jax: 0.10.0
libtpu: 0.0.40
codegen_flags: <defaults>
</compile_context>

<pallas_src>
import functools

import numpy as np
import jax
import jax.numpy as jnp
from jax import lax
from jax.experimental import pallas as pl
from jax.experimental.pallas import tpu as pltpu


# ----------------------------------------------------------------------------
# Shared tile compute: im2col -> single MXU matmul -> +bias -> ReLU
# ----------------------------------------------------------------------------
def _im2col_conv_tile(tile, w_mat, bias, *, th, w_out, kh, kw):
    """tile: (th+kh-1, Wp, Cin) halo window. Returns (th, w_out, Cout) f32."""
    cin = tile.shape[-1]
    cout = w_mat.shape[-1]
    cols = []
    for ky in range(kh):
        for kx in range(kw):
            cols.append(tile[ky:ky + th, kx:kx + w_out, :].reshape(th * w_out, cin))
    patch = jnp.concatenate(cols, axis=-1)                     # (th*W, kh*kw*Cin)
    y = jnp.dot(patch, w_mat, preferred_element_type=jnp.float32) + bias
    return jnp.maximum(y, 0.0).reshape(th, w_out, cout)


# ----------------------------------------------------------------------------
# Path A: whole padded image resident in VMEM (auto-pipelined BlockSpec)
# ----------------------------------------------------------------------------
def _resident_kernel(x_ref, w_ref, b_ref, o_ref, *, th, w_out, kh, kw):
    """x_ref: (1, Hp_alloc, Wp, Cin); w_ref: (k*k*Cin, Cout); b_ref: (1, Cout);
    o_ref: (1, th, W, Cout)."""
    r = pl.program_id(1)
    row0 = pl.multiple_of(r * th, th)
    tile = x_ref[0, pl.ds(row0, th + kh - 1)]                  # (th+kh-1, Wp, Cin)
    y = _im2col_conv_tile(tile, w_ref[...], b_ref[...],
                          th=th, w_out=w_out, kh=kh, kw=kw)
    o_ref[0] = y.astype(o_ref.dtype)


# ----------------------------------------------------------------------------
# Path B: input in HBM, manual double-buffered halo-row DMA per grid step
# ----------------------------------------------------------------------------
def _halo_kernel(x_hbm, w_ref, b_ref, o_ref, xbuf, sem, *, th, w_out, kh, kw):
    """x_hbm: (B, Hp_alloc, Wp, Cin) in HBM (pl.ANY); xbuf: (2, th+kh-1, Wp, Cin) VMEM."""
    b = pl.program_id(0)
    r = pl.program_id(1)
    nr = pl.num_programs(1)
    rows = th + kh - 1
    slot = lax.rem(r, 2)

    def fetch(row_tile_idx, slot_idx):
        pltpu.make_async_copy(
            x_hbm.at[b, pl.ds(row_tile_idx * th, rows)],
            xbuf.at[slot_idx],
            sem.at[slot_idx],
        ).start()

    @pl.when(r == 0)                     # prime the pipeline for this batch element
    def _():
        fetch(0, 0)

    pltpu.make_async_copy(               # wait for the current halo window
        x_hbm.at[b, pl.ds(r * th, rows)], xbuf.at[slot], sem.at[slot]).wait()

    @pl.when(r + 1 < nr)                 # prefetch next window of the same image
    def _():
        fetch(r + 1, 1 - slot)

    y = _im2col_conv_tile(xbuf[slot], w_ref[...], b_ref[...],
                          th=th, w_out=w_out, kh=kh, kw=kw)
    o_ref[0] = y.astype(o_ref.dtype)


# ----------------------------------------------------------------------------
# Wrapper
# ----------------------------------------------------------------------------
def _vmem_capacity_bytes():
    try:
        return int(pltpu.get_tpu_info().vmem_capacity_bytes)
    except Exception:
        return 64 * 2 ** 20              # conservative: assume v7x-sized VMEM


def _pick_row_tile(h, w, target_rows=2048):
    """Row tile so the matmul M-dim (th*W) is ~2K rows; 8-row aligned when possible."""
    th = max(1, min(h, max(1, target_rows // max(w, 1))))
    if th >= 8:
        th -= th % 8
    return max(1, th)


def m_conv_forward_nhwc(x_nhwc, w_mat, bias, *, kernel_size=3, row_tile=None,
                        compute_dtype=None, out_dtype=jnp.float32, strategy="auto"):
    """x_nhwc: (B, H, W, Cin); w_mat: (k*k*Cin, Cout) folded weights; bias: (Cout,).

    Returns ReLU(BN(Conv2d(x))) in NHWC. strategy in {"auto", "resident", "halo"}.
    """
    B, H, W, Cin = x_nhwc.shape
    k = kernel_size
    assert k % 2 == 1, "same-size output requires an odd kernel_size"
    K2C, Cout = w_mat.shape
    assert K2C == k * k * Cin
    pad = k // 2
    Wp = W + 2 * pad

    cdt = compute_dtype if compute_dtype is not None else x_nhwc.dtype
    elt = jnp.dtype(cdt).itemsize
    out_elt = jnp.dtype(out_dtype).itemsize

    th = row_tile if row_tile is not None else _pick_row_tile(H, W)
    th = min(th, H)
    n_tiles = pl.cdiv(H, th)
    rows = th + k - 1
    # Pad rows so every (possibly ragged) row tile can read a full halo window.
    Hp_alloc = n_tiles * th + 2 * pad

    # Cast + pad fused into one pass over x.
    xp = jnp.pad(x_nhwc.astype(cdt),
                 ((0, 0), (pad, Hp_alloc - pad - H), (pad, pad), (0, 0)))
    w = w_mat.astype(cdt)
    b2 = bias.reshape(1, Cout).astype(jnp.float32)

    # ---- honest VMEM footprint & strategy gate ------------------------------
    slab_bytes = Hp_alloc * Wp * Cin * elt           # one padded image
    tile_bytes = rows * Wp * Cin * elt               # one halo row window
    patch_bytes = th * W * K2C * elt                 # im2col patch
    acc_bytes = th * W * Cout * 4                    # f32 matmul result
    out_tile_bytes = th * W * Cout * out_elt
    weight_bytes = K2C * Cout * elt + Cout * 4
    common = 2 * out_tile_bytes + 2 * weight_bytes + tile_bytes + patch_bytes + acc_bytes
    resident_need = 2 * slab_bytes + common
    halo_need = 2 * tile_bytes + common

    capacity = _vmem_capacity_bytes()
    cap = int(0.75 * capacity)                       # ~96 MiB v5e/v6e, ~48 MiB v7x
    if strategy == "auto":
        strategy = "resident" if resident_need <= int(0.4 * capacity) else "halo"

    kernel_args = dict(th=th, w_out=W, kh=k, kw=k)
    out_shape = jax.ShapeDtypeStruct((B, H, W, Cout), out_dtype)
    w_spec = pl.BlockSpec((K2C, Cout), lambda bb, rr: (0, 0))
    b_spec = pl.BlockSpec((1, Cout), lambda bb, rr: (0, 0))
    o_spec = pl.BlockSpec((1, th, W, Cout), lambda bb, rr: (bb, rr, 0, 0))

    if strategy == "resident":
        vmem_limit = int(min(cap, max(int(1.3 * resident_need), 16 * 2 ** 20)))
        return pl.pallas_call(
            functools.partial(_resident_kernel, **kernel_args),
            grid=(B, n_tiles),
            in_specs=[
                pl.BlockSpec((1, Hp_alloc, Wp, Cin), lambda bb, rr: (bb, 0, 0, 0)),
                w_spec, b_spec,
            ],
            out_specs=o_spec,
            out_shape=out_shape,
            compiler_params=pltpu.CompilerParams(
                dimension_semantics=("parallel", "parallel"),
                vmem_limit_bytes=vmem_limit),
        )(xp, w, b2)

    # "halo": input stays in HBM; per-step manual DMA of only the halo window.
    vmem_limit = int(min(cap, max(int(1.3 * halo_need), 16 * 2 ** 20)))
    return pl.pallas_call(
        functools.partial(_halo_kernel, **kernel_args),
        grid=(B, n_tiles),
        in_specs=[
            pl.BlockSpec(memory_space=pl.ANY),
            w_spec, b_spec,
        ],
        out_specs=o_spec,
        out_shape=out_shape,
        scratch_shapes=[pltpu.VMEM((2, rows, Wp, Cin), cdt),
                        pltpu.SemaphoreType.DMA((2,))],
        compiler_params=pltpu.CompilerParams(
            dimension_semantics=("parallel", "arbitrary"),
            vmem_limit_bytes=vmem_limit),
    )(xp, w, b2)


def m_conv_forward(x_nchw, w_mat, bias, **kw):
    """PyTorch-compatible interface: NCHW in, NCHW out (single transpose at each end;
    inside a full network keep NHWC and call m_conv_forward_nhwc directly)."""
    x_nhwc = jnp.transpose(x_nchw, (0, 2, 3, 1))
    y_nhwc = m_conv_forward_nhwc(x_nhwc, w_mat, bias, **kw)
    return jnp.transpose(y_nhwc, (0, 3, 1, 2))


# ----------------------------------------------------------------------------
# Parameter folding: Conv2d + eval-mode BatchNorm2d -> (k*k*Cin, Cout) matrix + bias
# ----------------------------------------------------------------------------
def fold_bn_into_conv(conv_w, conv_b, gamma, beta, running_mean, running_var, eps=1e-5):
    """conv_w: (Cout, Cin, KH, KW) PyTorch layout. Returns (w_mat, bias) where
    w_mat row index = (ky*KW + kx)*Cin + c, matching the kernel's im2col order."""
    cout, cin, kh, kw = conv_w.shape
    scale = gamma / jnp.sqrt(running_var + eps)                      # (Cout,)
    w = conv_w * scale[:, None, None, None]
    b = (conv_b - running_mean) * scale + beta
    w_mat = jnp.transpose(w, (2, 3, 1, 0)).reshape(kh * kw * cin, cout)
    return w_mat, b


# ----------------------------------------------------------------------------
# Pure-JAX reference (for correctness checking)
# ----------------------------------------------------------------------------
def m_conv_reference(x_nchw, conv_w, conv_b, gamma, beta, running_mean, running_var,
                     eps=1e-5):
    k = conv_w.shape[-1]
    pad = k // 2
    y = lax.conv_general_dilated(
        x_nchw, conv_w, window_strides=(1, 1),
        padding=((pad, pad), (pad, pad)),
        dimension_numbers=("NCHW", "OIHW", "NCHW"),
        precision=lax.Precision.HIGHEST)
    y = y + conv_b[None, :, None, None]
    inv = gamma / jnp.sqrt(running_var + eps)
    y = (y - running_mean[None, :, None, None]) * inv[None, :, None, None] \
        + beta[None, :, None, None]
    return jnp.maximum(y, 0.0)


# ----------------------------------------------------------------------------
# Demo / correctness checks
# ----------------------------------------------------------------------------
if __name__ == "__main__":
    B, Cin, Cout, H, W = 2, 4, 32, 16, 16

    key = jax.random.PRNGKey(0)
    ks = jax.random.split(key, 7)
    x = jax.random.normal(ks[0], (B, Cin, H, W), jnp.float32)
    conv_w = jax.random.normal(ks[1], (Cout, Cin, 3, 3), jnp.float32) * 0.1
    conv_b = jax.random.normal(ks[2], (Cout,), jnp.float32) * 0.1
    gamma = 1.0 + 0.1 * jax.random.normal(ks[3], (Cout,), jnp.float32)
    beta = 0.1 * jax.random.normal(ks[4], (Cout,), jnp.float32)
    running_mean = 0.1 * jax.random.normal(ks[5], (Cout,), jnp.float32)
    running_var = jax.nn.softplus(jax.random.normal(ks[6], (Cout,), jnp.float32)) + 0.5

    w_mat, bias = fold_bn_into_conv(conv_w, conv_b, gamma, beta,
                                    running_mean, running_var)
    y_ref = m_conv_reference(x, conv_w, conv_b, gamma, beta, running_mean, running_var)

    # 1) Resident-slab path (auto-pipelined BlockSpec), f32, explicit row tiling.
    fwd_res = jax.jit(functools.partial(m_conv_forward, kernel_size=3, row_tile=8,
                                        strategy="resident"))
    y1 = jax.block_until_ready(fwd_res(x, w_mat, bias))
    assert y1.shape == (B, Cout, H, W)
    np.testing.assert_allclose(np.asarray(y1), np.asarray(y_ref), rtol=2e-2, atol=2e-2)

    # 2) Halo path (manual double-buffered halo-row DMA), f32, forced.
    fwd_halo = jax.jit(functools.partial(m_conv_forward, kernel_size=3, row_tile=8,
                                         strategy="halo"))
    y2 = jax.block_until_ready(fwd_halo(x, w_mat, bias))
    np.testing.assert_allclose(np.asarray(y2), np.asarray(y_ref), rtol=2e-2, atol=2e-2)

    # 3) Ragged H (row tile does not divide H): cdiv grid + masked last row tile.
    Hr = 13
    xr = jax.random.normal(ks[0], (B, Cin, Hr, W), jnp.float32)
    yr_ref = m_conv_reference(xr, conv_w, conv_b, gamma, beta, running_mean, running_var)
    fwd_rag = jax.jit(functools.partial(m_conv_forward, kernel_size=3, row_tile=8,
                                        strategy="resident"))
    y3 = jax.block_until_ready(fwd_rag(xr, w_mat, bias))
    np.testing.assert_allclose(np.asarray(y3), np.asarray(yr_ref), rtol=2e-2, atol=2e-2)

    # 4) bf16 operands (f32 accumulation) — halves HBM traffic on v6e/v7x.
    fwd_bf16 = jax.jit(functools.partial(m_conv_forward, kernel_size=3, row_tile=8,
                                         strategy="resident",
                                         compute_dtype=jnp.bfloat16))
    y4 = jax.block_until_ready(fwd_bf16(x, w_mat, bias))
    np.testing.assert_allclose(np.asarray(y4), np.asarray(y_ref), rtol=6e-2, atol=6e-2)

    print("KERNEL_OK")
</pallas_src>

<mosaic_0001>
module attributes {stable_mosaic.version = 11 : i64} {
  func.func @_resident_kernel(%arg0: i32, %arg1: i32, %arg2: memref<1x18x18x4xf32, #tpu.memory_space<vmem>>, %arg3: memref<36x32xf32, #tpu.memory_space<vmem>>, %arg4: memref<1x32xf32, #tpu.memory_space<vmem>>, %arg5: memref<1x8x16x32xf32, #tpu.memory_space<vmem>>) attributes {dimension_semantics = [#tpu.dimension_semantics<parallel>, #tpu.dimension_semantics<parallel>], iteration_bounds = array<i64: 2, 2>, scalar_prefetch = 0 : i64, scratch_operands = 0 : i64, tpu.core_type = #tpu.core_type<tc>, window_params = [{transform_indices = @transform_0, window_bounds = array<i64: 1, 18, 18, 4>}, {pipeline_mode = #tpu.pipeline_mode<synchronous>, transform_indices = @transform_1, window_bounds = array<i64: 36, 32>}, {pipeline_mode = #tpu.pipeline_mode<synchronous>, transform_indices = @transform_2, window_bounds = array<i64: 1, 32>}, {transform_indices = @transform_3, window_bounds = array<i64: 1, 8, 16, 32>}]} {
    %c8_i32 = arith.constant 8 : i32
    %0 = arith.muli %arg1, %c8_i32 : i32
    %1 = tpu.assume_multiple %0, 8 : i32
    %c0 = arith.constant 0 : index
    %2 = arith.index_cast %1 : i32 to index
    %c0_0 = arith.constant 0 : index
    %c0_1 = arith.constant 0 : index
    %3 = vector.load %arg2[%c0, %2, %c0_0, %c0_1] : memref<1x18x18x4xf32, #tpu.memory_space<vmem>>, vector<1x10x18x4xf32>
    %4 = vector.shape_cast %3 : vector<1x10x18x4xf32> to vector<10x18x4xf32>
    %c0_2 = arith.constant 0 : index
    %c0_3 = arith.constant 0 : index
    %5 = vector.load %arg3[%c0_2, %c0_3] : memref<36x32xf32, #tpu.memory_space<vmem>>, vector<36x32xf32>
    %c0_4 = arith.constant 0 : index
    %c0_5 = arith.constant 0 : index
    %6 = vector.load %arg4[%c0_4, %c0_5] : memref<1x32xf32, #tpu.memory_space<vmem>>, vector<1x32xf32>
    %7 = vector.extract_strided_slice %4 {offsets = [0, 0, 0], sizes = [8, 16, 4], strides = [1, 1, 1]} : vector<10x18x4xf32> to vector<8x16x4xf32>
    %8 = vector.shape_cast %7 : vector<8x16x4xf32> to vector<128x4xf32>
    %9 = vector.extract_strided_slice %4 {offsets = [0, 1, 0], sizes = [8, 16, 4], strides = [1, 1, 1]} : vector<10x18x4xf32> to vector<8x16x4xf32>
    %10 = vector.shape_cast %9 : vector<8x16x4xf32> to vector<128x4xf32>
    %11 = vector.extract_strided_slice %4 {offsets = [0, 2, 0], sizes = [8, 16, 4], strides = [1, 1, 1]} : vector<10x18x4xf32> to vector<8x16x4xf32>
    %12 = vector.shape_cast %11 : vector<8x16x4xf32> to vector<128x4xf32>
    %13 = vector.extract_strided_slice %4 {offsets = [1, 0, 0], sizes = [8, 16, 4], strides = [1, 1, 1]} : vector<10x18x4xf32> to vector<8x16x4xf32>
    %14 = vector.shape_cast %13 : vector<8x16x4xf32> to vector<128x4xf32>
    %15 = vector.extract_strided_slice %4 {offsets = [1, 1, 0], sizes = [8, 16, 4], strides = [1, 1, 1]} : vector<10x18x4xf32> to vector<8x16x4xf32>
    %16 = vector.shape_cast %15 : vector<8x16x4xf32> to vector<128x4xf32>
    %17 = vector.extract_strided_slice %4 {offsets = [1, 2, 0], sizes = [8, 16, 4], strides = [1, 1, 1]} : vector<10x18x4xf32> to vector<8x16x4xf32>
    %18 = vector.shape_cast %17 : vector<8x16x4xf32> to vector<128x4xf32>
    %19 = vector.extract_strided_slice %4 {offsets = [2, 0, 0], sizes = [8, 16, 4], strides = [1, 1, 1]} : vector<10x18x4xf32> to vector<8x16x4xf32>
    %20 = vector.shape_cast %19 : vector<8x16x4xf32> to vector<128x4xf32>
    %21 = vector.extract_strided_slice %4 {offsets = [2, 1, 0], sizes = [8, 16, 4], strides = [1, 1, 1]} : vector<10x18x4xf32> to vector<8x16x4xf32>
    %22 = vector.shape_cast %21 : vector<8x16x4xf32> to vector<128x4xf32>
    %23 = vector.extract_strided_slice %4 {offsets = [2, 2, 0], sizes = [8, 16, 4], strides = [1, 1, 1]} : vector<10x18x4xf32> to vector<8x16x4xf32>
    %24 = vector.shape_cast %23 : vector<8x16x4xf32> to vector<128x4xf32>
    %25 = tpu.concatenate %8, %10, %12, %14, %16, %18, %20, %22, %24 in 1 : vector<128x4xf32>, vector<128x4xf32>, vector<128x4xf32>, vector<128x4xf32>, vector<128x4xf32>, vector<128x4xf32>, vector<128x4xf32>, vector<128x4xf32>, vector<128x4xf32> -> vector<128x36xf32>
    %cst = arith.constant dense<0.000000e+00> : vector<128x32xf32>
    %26 = tpu.matmul %25, %5, %cst {dimension_numbers = #tpu.dot_dimension_numbers<[1], [0], [0], [1], [0, 0, 1, 1], [], []>} : vector<128x36xf32>, vector<36x32xf32>, vector<128x32xf32> -> vector<128x32xf32>
    %27 = vector.broadcast %6 : vector<1x32xf32> to vector<128x32xf32>
    %28 = arith.addf %26, %27 : vector<128x32xf32>
    %cst_6 = arith.constant 0.000000e+00 : f32
    %29 = vector.broadcast %cst_6 : f32 to vector<128x32xf32>
    %30 = arith.maximumf %28, %29 : vector<128x32xf32>
    %31 = vector.shape_cast %30 : vector<128x32xf32> to vector<8x16x32xf32>
    %c0_7 = arith.constant 0 : index
    %c0_8 = arith.constant 0 : index
    %c0_9 = arith.constant 0 : index
    %c0_10 = arith.constant 0 : index
    %32 = vector.load %arg5[%c0_7, %c0_8, %c0_9, %c0_10] : memref<1x8x16x32xf32, #tpu.memory_space<vmem>>, vector<1x8x16x32xf32>
    %33 = vector.shape_cast %32 : vector<1x8x16x32xf32> to vector<8x16x32xf32>
    %34 = vector.shape_cast %31 : vector<8x16x32xf32> to vector<1x8x16x32xf32>
    tpu.vector_store %arg5[%c0_7, %c0_8, %c0_9, %c0_10], %34 {strides = array<i32>} : memref<1x8x16x32xf32, #tpu.memory_space<vmem>>, vector<1x8x16x32xf32>,
    return
  }
  func.func @transform_0(%arg0: i32, %arg1: i32) -> (i32, i32, i32, i32) {
    %c0_i32 = arith.constant 0 : i32
    %c0_i32_0 = arith.constant 0 : i32
    %c0_i32_1 = arith.constant 0 : i32
    %c0_i32_2 = arith.constant 0 : i32
    return %arg0, %c0_i32, %c0_i32_0, %c0_i32_1 : i32, i32, i32, i32
  }
  func.func @transform_1(%arg0: i32, %arg1: i32) -> (i32, i32) {
    %c0_i32 = arith.constant 0 : i32
    %c0_i32_0 = arith.constant 0 : i32
    %c0_i32_1 = arith.constant 0 : i32
    return %c0_i32, %c0_i32_0 : i32, i32
  }
  func.func @transform_2(%arg0: i32, %arg1: i32) -> (i32, i32) {
    %c0_i32 = arith.constant 0 : i32
    %c0_i32_0 = arith.constant 0 : i32
    %c0_i32_1 = arith.constant 0 : i32
    return %c0_i32, %c0_i32_0 : i32, i32
  }
  func.func @transform_3(%arg0: i32, %arg1: i32) -> (i32, i32, i32, i32) {
    %c0_i32 = arith.constant 0 : i32
    %c0_i32_0 = arith.constant 0 : i32
    %c0_i32_1 = arith.constant 0 : i32
    return %arg0, %arg1, %c0_i32, %c0_i32_0 : i32, i32, i32, i32
  }
}

</mosaic_0001>

<llo_original>
// kernel: m_conv_forward.1
$region0: #{m_conv_forward.1}
  #allocation0 [shape = 'u32[]', space=smem, size = 0x4, offset = 0x4, fixed_abs, tag = 'smem constant byte address 0x4 - core index']
  #allocation1 [shape = 'u32[144,128]{1,0:T(1,128)}', space=vmem, size = 0x12000, scoped, tag = 'internal scratch']
  %s0 = inlined_call_operand.vmem [shape: f32[2,18,18,4], index: 0, kind: input, shape index: {}]
  %s1 = inlined_call_operand.vmem [shape: f32[36,32], index: 1, kind: input, shape index: {}]
  %s2 = inlined_call_operand.vmem [shape: f32[1,32], index: 2, kind: input, shape index: {}]
  %s3 = inlined_call_operand.hbm [shape: f32[2,16,16,32], index: 3, kind: output, shape index: {}]
  %s4 = sld [smem:[#allocation0]]
  $region45: #{m_conv_forward.1} parent=0
    _
  %s6 = ssub.s32 1, %s4
  %s7 = scalar_select 0, %s6, %s4
  $region1: #{m_conv_forward.1} parent=0
    #allocation2 [shape = 'u8[131072]{0}', space=vmem, size = 0x20000, scoped, tag = 'output window, operand 0']
    #allocation3 [shape = 's32[2]{0}', space=sflag, size = 0x8, scoped, tag = 'scoped memory for m_conv_forward.1']
    %8 = vsyncpa [#allocation3], 0
    %s9 = scalar_lea.sflag [#allocation3], 1
    %10 = vsyncpa %s9, 0
    loop: start=0, step=1, limit=6
    $region2: #{m_conv_forward.1} parent=1 // loop_pre_header
      _
    $region3: #{m_conv_forward.1} parent=1 // loop_header
      %s12 = sphi 0, %s16
      %p13 = scmp.ge.s32.totalorder %s12, 6
      %s19 = sphi 0, %s31
      %s20 = sphi 0, %s27
      %s21 = sphi 0, %s19
      %s22 = sphi 0, %s20
      %s23 = sphi 0, %s21
      %s24 = sphi 0, %s22
      %s34 = sphi 0, %s36
      %s37 = sphi 0, %s34
      %s38 = sphi 0, %s37
      %s54 = sphi 0, %s38
      %s58 = sphi 0, %s58
      %s60 = sphi 0, %s58
      %s61 = sphi 0, %s60
      %s75 = sphi 0, %s61
      %s79 = sphi 0, %s79
      %s81 = sphi 0, %s79
      %s82 = sphi 0, %s81
      %s96 = sphi 0, %s82
      %s104 = sphi 0, %s106
      %s107 = sphi 0, %s104
      %s108 = sphi 0, %s107
      %s124 = sphi 0, %s108
    $region4: #{m_conv_forward.1} parent=1 // loop_header_branch
      %15 = sbr.rel (%p13) target = $region8
    $region5: #{m_conv_forward.1} parent=1 // loop_body
      %s17 = ssub.s32 %s12, 1
      %s18 = ssub.s32 %s12, 2
      %s25 = sadd.s32 1, %s20
      %p26 = scmp.ge.s32.totalorder %s25, 2
      %s27 = scalar_select %p26, 0, %s25
      %s28 = sadd.s32 1, %s19
      %s29 = scalar_select %p26, %s28, %s19
      %p30 = scmp.ge.s32.totalorder %s29, 2
      %s31 = scalar_select %p30, 0, %s29
      %s32 = ssub.s32 %s19, %s31
      %p33 = scmp.eq.s32.totalorder %s32, 0
      %s35 = sadd.s32 %s34, 1
      %s36 = scalar_select %p33, %s34, %s35
      %p39 = pneg %p33
      %p40 = scmp.eq.s32.totalorder %s12, 3
      %p41 = por %p39, %p40
      %p42 = scmp.ne.s32.totalorder %s34, %s37
      %p43 = scmp.eq.s32.totalorder %s12, 0
      %p44 = por %p42, %p43
      %p45 = scmp.ne.s32.totalorder %s34, %s37
      %p46 = scmp.eq.s32.totalorder %s17, 3
      %p47 = por %p45, %p46
      %p48 = scmp.ne.s32.totalorder %s37, %s38
      %p49 = scmp.eq.s32.totalorder %s17, 0
      %p50 = por %p48, %p49
      %p51 = scmp.ne.s32.totalorder %s37, %s38
      %p52 = scmp.eq.s32.totalorder %s18, 3
      %p53 = por %p51, %p52
      %p55 = scmp.ne.s32.totalorder %s38, %s54
      %p56 = scmp.eq.s32.totalorder %s18, 0
      %p57 = por %p55, %p56
      %s59 = sadd.s32 %s58, 1
      %p62 = scmp.eq.s32.totalorder %s12, 3
      %p63 = scmp.ne.s32.totalorder %s58, %s60
      %p64 = scmp.eq.s32.totalorder %s12, 0
      %p65 = por %p63, %p64
      %p66 = scmp.ne.s32.totalorder %s58, %s60
      %p67 = scmp.eq.s32.totalorder %s17, 3
      %p68 = por %p66, %p67
      %p69 = scmp.ne.s32.totalorder %s60, %s61
      %p70 = scmp.eq.s32.totalorder %s17, 0
      %p71 = por %p69, %p70
      %p72 = scmp.ne.s32.totalorder %s60, %s61
      %p73 = scmp.eq.s32.totalorder %s18, 3
      %p74 = por %p72, %p73
      %p76 = scmp.ne.s32.totalorder %s61, %s75
      %p77 = scmp.eq.s32.totalorder %s18, 0
      %p78 = por %p76, %p77
      %s80 = sadd.s32 %s79, 1
      %p83 = scmp.eq.s32.totalorder %s12, 3
      %p84 = scmp.ne.s32.totalorder %s79, %s81
      %p85 = scmp.eq.s32.totalorder %s12, 0
      %p86 = por %p84, %p85
      %p87 = scmp.ne.s32.totalorder %s79, %s81
      %p88 = scmp.eq.s32.totalorder %s17, 3
      %p89 = por %p87, %p88
      %p90 = scmp.ne.s32.totalorder %s81, %s82
      %p91 = scmp.eq.s32.totalorder %s17, 0
      %p92 = por %p90, %p91
      %p93 = scmp.ne.s32.totalorder %s81, %s82
      %p94 = scmp.eq.s32.totalorder %s18, 3
      %p95 = por %p93, %p94
      %p97 = scmp.ne.s32.totalorder %s82, %s96
      %p98 = scmp.eq.s32.totalorder %s18, 0
      %p99 = por %p97, %p98
      %s100 = ssub.s32 %s19, %s31
      %s101 = ssub.s32 %s20, %s27
      %s102 = sor.u32 %s100, %s101
      %p103 = scmp.eq.s32.totalorder %s102, 0
      %s105 = sadd.s32 %s104, 1
      %s106 = scalar_select %p103, %s104, %s105
      %p109 = pneg %p103
      %p110 = scmp.eq.s32.totalorder %s12, 3
      %p111 = por %p109, %p110
      %p112 = scmp.ne.s32.totalorder %s104, %s107
      %p113 = scmp.eq.s32.totalorder %s12, 0
      %p114 = por %p112, %p113
      %p115 = scmp.ne.s32.totalorder %s104, %s107
      %p116 = scmp.eq.s32.totalorder %s17, 3
      %p117 = por %p115, %p116
      %p118 = scmp.ne.s32.totalorder %s107, %s108
      %p119 = scmp.eq.s32.totalorder %s17, 0
      %p120 = por %p118, %p119
      %p121 = scmp.ne.s32.totalorder %s107, %s108
      %p122 = scmp.eq.s32.totalorder %s18, 3
      %p123 = por %p121, %p122
      %p125 = scmp.ne.s32.totalorder %s108, %s124
      %p126 = scmp.eq.s32.totalorder %s18, 0
      %p127 = por %p125, %p126
      %p128 = scmp.le.s32.totalorder 1, %s12
      %p129 = scmp.lt.s32.totalorder %s12, 5
      %p130 = pnand %p128, %p129
      %p131 = pneg %p130
      // Predicated region
      $region9: #{m_conv_forward.1} parent=5 // pred_check
        _
      $region10: #{m_conv_forward.1} parent=5 // pred_check_branch
        %133 = sbr.rel (%p130) target = $region12
      $region11: #{m_conv_forward.1} parent=5 // pred_region
        %s134 = ssub.s32 %s12, 1
        // Predicated region
        $region13: #{m_conv_forward.1} parent=11 // pred_check
          %p135 = pneg %p71
        $region14: #{m_conv_forward.1} parent=11 // pred_check_branch
          %137 = sbr.rel (%p135) target = $region16
        $region15: #{m_conv_forward.1} parent=11 // pred_region
          _
        $region16: #{m_conv_forward.1} parent=11 // pred_fallthru
          _
        // Predicated region
        $region17: #{m_conv_forward.1} parent=11 // pred_check
          %p138 = pneg %p92
        $region18: #{m_conv_forward.1} parent=11 // pred_check_branch
          %140 = sbr.rel (%p138) target = $region20
        $region19: #{m_conv_forward.1} parent=11 // pred_region
          _
        $region20: #{m_conv_forward.1} parent=11 // pred_fallthru
          _
      $region12: #{m_conv_forward.1} parent=5 // pred_fallthru
        _
      %p141 = scmp.lt.s32.totalorder %s12, 4
      // Predicated region
      $region21: #{m_conv_forward.1} parent=5 // pred_check
        %p142 = pneg %p141
      $region22: #{m_conv_forward.1} parent=5 // pred_check_branch
        %144 = sbr.rel (%p142) target = $region24
      $region23: #{m_conv_forward.1} parent=5 // pred_region
        // Predicated region
        $region25: #{m_conv_forward.1} parent=23 // pred_check
          %p145 = pneg %p44
        $region26: #{m_conv_forward.1} parent=23 // pred_check_branch
          %147 = sbr.rel (%p145) target = $region28
        $region27: #{m_conv_forward.1} parent=23 // pred_region
          %p148 = scmp.lt.s32.totalorder %s19, 1
          %s149 = scalar_select %p148, %s19, 1
          %s150 = smul.addr %s149, 54
          %s151 = smul.addr %s150, 8
          %s152 = scalar_lea.vmem %s0, %s151
        $region28: #{m_conv_forward.1} parent=23 // pred_fallthru
          _
      $region24: #{m_conv_forward.1} parent=5 // pred_fallthru
        _
      %p153 = scmp.le.s32.totalorder 1, %s12
      %p154 = scmp.lt.s32.totalorder %s12, 5
      %p155 = pnand %p153, %p154
      %p156 = pneg %p155
      // Predicated region
      $region29: #{m_conv_forward.1} parent=5 // pred_check
        _
      $region30: #{m_conv_forward.1} parent=5 // pred_check_branch
        %158 = sbr.rel (%p155) target = $region32
      $region31: #{m_conv_forward.1} parent=5 // pred_region
        %s159 = ssub.s32 %s12, 1
        %p160 = scmp.lt.s32.totalorder %s21, 1
        %s161 = scalar_select %p160, %s21, 1
        %s162 = smul.addr %s161, 54
        %s163 = smul.addr %s162, 8
        %s164 = scalar_lea.vmem %s0, %s163
        %p165 = pneg %p50
        %p166 = pneg %p47
        %p167 = pneg %p71
        %p168 = pneg %p68
        %p169 = pneg %p92
        %p170 = pneg %p89
        %p171 = pneg %p120
        %p172 = pneg %p117
        %s173 = sand.u32 %s107, 1
        %s174 = scalar_lea.sflag [#allocation3], %s173
        %s175 = sand.u32 %s107, 1
        %s176 = smul.addr %s175, 128
        %s177 = scalar_lea.vmem [#allocation2], %s176
        %p178 = scmp.lt.s32.totalorder %s21, 1
        %s179 = scalar_select %p178, %s21, 1
        %s180 = smul.addr %s179, 54
        %s181 = smul.addr %s180, 8
        %s182 = scalar_lea.vmem %s0, %s181
        %s183 = smul.u32 8, %s22
        %s184 = smul.u32 %s22, 8
        %s185 = smul.u32 %s184, 24
        %s186 = scalar_lea.vmem %s182, %s185
        %v187 = vld [vmem:[%s186] sm:$0xff]
        %v188 = vld [vmem:[%s186 + $0x8] sm:$0xff]
        %v189 = vld [vmem:[%s186 + $0x10] sm:$0x3]
        %v190 = vld [vmem:[%s186 + $0x18] sm:$0xff]
        %v191 = vld [vmem:[%s186 + $0x20] sm:$0xff]
        %v192 = vld [vmem:[%s186 + $0x28] sm:$0x3]
        %v193 = vld [vmem:[%s186 + $0x30] sm:$0xff]
        %v194 = vld [vmem:[%s186 + $0x38] sm:$0xff]
        %v195 = vld [vmem:[%s186 + $0x40] sm:$0x3]
        %v196 = vld [vmem:[%s186 + $0x48] sm:$0xff]
        %v197 = vld [vmem:[%s186 + $0x50] sm:$0xff]
        %v198 = vld [vmem:[%s186 + $0x58] sm:$0x3]
        %v199 = vld [vmem:[%s186 + $0x60] sm:$0xff]
        %v200 = vld [vmem:[%s186 + $0x68] sm:$0xff]
        %v201 = vld [vmem:[%s186 + $0x70] sm:$0x3]
        %v202 = vld [vmem:[%s186 + $0x78] sm:$0xff]
        %v203 = vld [vmem:[%s186 + $0x80] sm:$0xff]
        %v204 = vld [vmem:[%s186 + $0x88] sm:$0x3]
        %v205 = vld [vmem:[%s186 + $0x90] sm:$0xff]
        %v206 = vld [vmem:[%s186 + $0x98] sm:$0xff]
        %v207 = vld [vmem:[%s186 + $0xa0] sm:$0x3]
        %v208 = vld [vmem:[%s186 + $0xa8] sm:$0xff]
        %v209 = vld [vmem:[%s186 + $0xb0] sm:$0xff]
        %v210 = vld [vmem:[%s186 + $0xb8] sm:$0x3]
        %v211 = vld [vmem:[%s186 + $0xc0] sm:$0xff]
        %v212 = vld [vmem:[%s186 + $0xc8] sm:$0xff]
        %v213 = vld [vmem:[%s186 + $0xd0] sm:$0x3]
        %v214 = vld [vmem:[%s186 + $0xd8] sm:$0xff]
        %v215 = vld [vmem:[%s186 + $0xe0] sm:$0xff]
        %v216 = vld [vmem:[%s186 + $0xe8] sm:$0x3]
        %v217 = vld [vmem:[%s1] sm:$0xff]
        %v218 = vld [vmem:[%s1 + $0x8] sm:$0xff]
        %v219 = vld [vmem:[%s1 + $0x10] sm:$0xff]
        %v220 = vld [vmem:[%s1 + $0x18] sm:$0xff]
        %v221 = vld [vmem:[%s1 + $0x20] sm:$0xf]
        %v222 = vld [vmem:[%s2] sm:$0x1]
        %vm247 = vcmask 1046528
        %v248 = vrot.slane %v187, 1
        %v249 = vrot.slane %v188, 1
        %v250 = vsel %vm247, %v248, %v249
        %v251 = vrot.slane %v189, 1
        %v252 = vsel %vm247, %v249, %v251
        %v253 = vrot.slane %v190, 1
        %v254 = vrot.slane %v191, 1
        %v255 = vsel %vm247, %v253, %v254
        %v256 = vrot.slane %v192, 1
        %v257 = vsel %vm247, %v254, %v256
        %v258 = vrot.slane %v193, 1
        %v259 = vrot.slane %v194, 1
        %v260 = vsel %vm247, %v258, %v259
        %v261 = vrot.slane %v195, 1
        %v262 = vsel %vm247, %v259, %v261
        %v263 = vrot.slane %v196, 1
        %v264 = vrot.slane %v197, 1
        %v265 = vsel %vm247, %v263, %v264
        %v266 = vrot.slane %v198, 1
        %v267 = vsel %vm247, %v264, %v266
        %v268 = vrot.slane %v199, 1
        %v269 = vrot.slane %v200, 1
        %v270 = vsel %vm247, %v268, %v269
        %v271 = vrot.slane %v201, 1
        %v272 = vsel %vm247, %v269, %v271
        %v273 = vrot.slane %v202, 1
        %v274 = vrot.slane %v203, 1
        %v275 = vsel %vm247, %v273, %v274
        %v276 = vrot.slane %v204, 1
        %v277 = vsel %vm247, %v274, %v276
        %v278 = vrot.slane %v205, 1
        %v279 = vrot.slane %v206, 1
        %v280 = vsel %vm247, %v278, %v279
        %v281 = vrot.slane %v207, 1
        %v282 = vsel %vm247, %v279, %v281
        %v283 = vrot.slane %v208, 1
        %v284 = vrot.slane %v209, 1
        %v285 = vsel %vm247, %v283, %v284
        %v286 = vrot.slane %v210, 1
        %v287 = vsel %vm247, %v284, %v286
        %vm288 = vcmask 1045504
        %v289 = vrot.slane %v187, 2
        %v290 = vrot.slane %v188, 2
        %v291 = vsel %vm288, %v289, %v290
        %v292 = vrot.slane %v189, 2
        %v293 = vsel %vm288, %v290, %v292
        %v294 = vrot.slane %v190, 2
        %v295 = vrot.slane %v191, 2
        %v296 = vsel %vm288, %v294, %v295
        %v297 = vrot.slane %v192, 2
        %v298 = vsel %vm288, %v295, %v297
        %v299 = vrot.slane %v193, 2
        %v300 = vrot.slane %v194, 2
        %v301 = vsel %vm288, %v299, %v300
        %v302 = vrot.slane %v195, 2
        %v303 = vsel %vm288, %v300, %v302
        %v304 = vrot.slane %v196, 2
        %v305 = vrot.slane %v197, 2
        %v306 = vsel %vm288, %v304, %v305
        %v307 = vrot.slane %v198, 2
        %v308 = vsel %vm288, %v305, %v307
        %v309 = vrot.slane %v199, 2
        %v310 = vrot.slane %v200, 2
        %v311 = vsel %vm288, %v309, %v310
        %v312 = vrot.slane %v201, 2
        %v313 = vsel %vm288, %v310, %v312
        %v314 = vrot.slane %v202, 2
        %v315 = vrot.slane %v203, 2
        %v316 = vsel %vm288, %v314, %v315
        %v317 = vrot.slane %v204, 2
        %v318 = vsel %vm288, %v315, %v317
        %v319 = vrot.slane %v205, 2
        %v320 = vrot.slane %v206, 2
        %v321 = vsel %vm288, %v319, %v320
        %v322 = vrot.slane %v207, 2
        %v323 = vsel %vm288, %v320, %v322
        %v324 = vrot.slane %v208, 2
        %v325 = vrot.slane %v209, 2
        %v326 = vsel %vm288, %v324, %v325
        %v327 = vrot.slane %v210, 2
        %v328 = vsel %vm288, %v325, %v327
        %v332 = vrot.slane %v211, 1
        %v333 = vrot.slane %v212, 1
        %v334 = vsel %vm247, %v332, %v333
        %v335 = vrot.slane %v213, 1
        %v336 = vsel %vm247, %v333, %v335
        %v337 = vrot.slane %v211, 2
        %v338 = vrot.slane %v212, 2
        %v339 = vsel %vm288, %v337, %v338
        %v340 = vrot.slane %v213, 2
        %v341 = vsel %vm288, %v338, %v340
        %v345 = vrot.slane %v214, 1
        %v346 = vrot.slane %v215, 1
        %v347 = vsel %vm247, %v345, %v346
        %v348 = vrot.slane %v216, 1
        %v349 = vsel %vm247, %v346, %v348
        %v350 = vrot.slane %v214, 2
        %v351 = vrot.slane %v215, 2
        %v352 = vsel %vm288, %v350, %v351
        %v353 = vrot.slane %v216, 2
        %v354 = vsel %vm288, %v351, %v353
        %355 = vrot.lane.b32.xlu0 %v250, 4
        %v356 = vpop.permute.xlu0 %355
        %357 = vrot.lane.b32.xlu0 %v252, 4
        %v358 = vpop.permute.xlu0 %357
        %359 = vrot.lane.b32.xlu0 %v255, 4
        %v360 = vpop.permute.xlu0 %359
        %361 = vrot.lane.b32.xlu0 %v257, 4
        %v362 = vpop.permute.xlu0 %361
        %363 = vrot.lane.b32.xlu0 %v260, 4
        %v364 = vpop.permute.xlu0 %363
        %365 = vrot.lane.b32.xlu0 %v262, 4
        %v366 = vpop.permute.xlu0 %365
        %367 = vrot.lane.b32.xlu0 %v265, 4
        %v368 = vpop.permute.xlu0 %367
        %369 = vrot.lane.b32.xlu0 %v267, 4
        %v370 = vpop.permute.xlu0 %369
        %371 = vrot.lane.b32.xlu0 %v270, 4
        %v372 = vpop.permute.xlu0 %371
        %373 = vrot.lane.b32.xlu0 %v272, 4
        %v374 = vpop.permute.xlu0 %373
        %375 = vrot.lane.b32.xlu0 %v275, 4
        %v376 = vpop.permute.xlu0 %375
        %377 = vrot.lane.b32.xlu0 %v277, 4
        %v378 = vpop.permute.xlu0 %377
        %379 = vrot.lane.b32.xlu0 %v280, 4
        %v380 = vpop.permute.xlu0 %379
        %381 = vrot.lane.b32.xlu0 %v282, 4
        %v382 = vpop.permute.xlu0 %381
        %383 = vrot.lane.b32.xlu0 %v285, 4
        %v384 = vpop.permute.xlu0 %383
        %385 = vrot.lane.b32.xlu0 %v287, 4
        %v386 = vpop.permute.xlu0 %385
        %403 = vrot.lane.b32.xlu0 %v291, 8
        %v404 = vpop.permute.xlu0 %403
        %405 = vrot.lane.b32.xlu0 %v293, 8
        %v406 = vpop.permute.xlu0 %405
        %407 = vrot.lane.b32.xlu0 %v296, 8
        %v408 = vpop.permute.xlu0 %407
        %409 = vrot.lane.b32.xlu0 %v298, 8
        %v410 = vpop.permute.xlu0 %409
        %411 = vrot.lane.b32.xlu0 %v301, 8
        %v412 = vpop.permute.xlu0 %411
        %413 = vrot.lane.b32.xlu0 %v303, 8
        %v414 = vpop.permute.xlu0 %413
        %415 = vrot.lane.b32.xlu0 %v306, 8
        %v416 = vpop.permute.xlu0 %415
        %417 = vrot.lane.b32.xlu0 %v308, 8
        %v418 = vpop.permute.xlu0 %417
        %419 = vrot.lane.b32.xlu0 %v311, 8
        %v420 = vpop.permute.xlu0 %419
        %421 = vrot.lane.b32.xlu0 %v313, 8
        %v422 = vpop.permute.xlu0 %421
        %423 = vrot.lane.b32.xlu0 %v316, 8
        %v424 = vpop.permute.xlu0 %423
        %425 = vrot.lane.b32.xlu0 %v318, 8
        %v426 = vpop.permute.xlu0 %425
        %427 = vrot.lane.b32.xlu0 %v321, 8
        %v428 = vpop.permute.xlu0 %427
        %429 = vrot.lane.b32.xlu0 %v323, 8
        %v430 = vpop.permute.xlu0 %429
        %431 = vrot.lane.b32.xlu0 %v326, 8
        %v432 = vpop.permute.xlu0 %431
        %433 = vrot.lane.b32.xlu0 %v328, 8
        %v434 = vpop.permute.xlu0 %433
        %451 = vrot.lane.b32.xlu0 %v190, 12
        %v452 = vpop.permute.xlu0 %451
        %453 = vrot.lane.b32.xlu0 %v191, 12
        %v454 = vpop.permute.xlu0 %453
        %455 = vrot.lane.b32.xlu0 %v193, 12
        %v456 = vpop.permute.xlu0 %455
        %457 = vrot.lane.b32.xlu0 %v194, 12
        %v458 = vpop.permute.xlu0 %457
        %459 = vrot.lane.b32.xlu0 %v196, 12
        %v460 = vpop.permute.xlu0 %459
        %461 = vrot.lane.b32.xlu0 %v197, 12
        %v462 = vpop.permute.xlu0 %461
        %463 = vrot.lane.b32.xlu0 %v199, 12
        %v464 = vpop.permute.xlu0 %463
        %465 = vrot.lane.b32.xlu0 %v200, 12
        %v466 = vpop.permute.xlu0 %465
        %467 = vrot.lane.b32.xlu0 %v202, 12
        %v468 = vpop.permute.xlu0 %467
        %469 = vrot.lane.b32.xlu0 %v203, 12
        %v470 = vpop.permute.xlu0 %469
        %471 = vrot.lane.b32.xlu0 %v205, 12
        %v472 = vpop.permute.xlu0 %471
        %473 = vrot.lane.b32.xlu0 %v206, 12
        %v474 = vpop.permute.xlu0 %473
        %475 = vrot.lane.b32.xlu0 %v208, 12
        %v476 = vpop.permute.xlu0 %475
        %477 = vrot.lane.b32.xlu0 %v209, 12
        %v478 = vpop.permute.xlu0 %477
        %479 = vrot.lane.b32.xlu0 %v211, 12
        %v480 = vpop.permute.xlu0 %479
        %481 = vrot.lane.b32.xlu0 %v212, 12
        %v482 = vpop.permute.xlu0 %481
        %499 = vrot.lane.b32.xlu0 %v255, 16
        %v500 = vpop.permute.xlu0 %499
        %501 = vrot.lane.b32.xlu0 %v257, 16
        %v502 = vpop.permute.xlu0 %501
        %503 = vrot.lane.b32.xlu0 %v260, 16
        %v504 = vpop.permute.xlu0 %503
        %505 = vrot.lane.b32.xlu0 %v262, 16
        %v506 = vpop.permute.xlu0 %505
        %507 = vrot.lane.b32.xlu0 %v265, 16
        %v508 = vpop.permute.xlu0 %507
        %509 = vrot.lane.b32.xlu0 %v267, 16
        %v510 = vpop.permute.xlu0 %509
        %511 = vrot.lane.b32.xlu0 %v270, 16
        %v512 = vpop.permute.xlu0 %511
        %513 = vrot.lane.b32.xlu0 %v272, 16
        %v514 = vpop.permute.xlu0 %513
        %515 = vrot.lane.b32.xlu0 %v275, 16
        %v516 = vpop.permute.xlu0 %515
        %517 = vrot.lane.b32.xlu0 %v277, 16
        %v518 = vpop.permute.xlu0 %517
        %519 = vrot.lane.b32.xlu0 %v280, 16
        %v520 = vpop.permute.xlu0 %519
        %521 = vrot.lane.b32.xlu0 %v282, 16
        %v522 = vpop.permute.xlu0 %521
        %523 = vrot.lane.b32.xlu0 %v285, 16
        %v524 = vpop.permute.xlu0 %523
        %525 = vrot.lane.b32.xlu0 %v287, 16
        %v526 = vpop.permute.xlu0 %525
        %527 = vrot.lane.b32.xlu0 %v334, 16
        %v528 = vpop.permute.xlu0 %527
        %529 = vrot.lane.b32.xlu0 %v336, 16
        %v530 = vpop.permute.xlu0 %529
        %547 = vrot.lane.b32.xlu0 %v296, 20
        %v548 = vpop.permute.xlu0 %547
        %549 = vrot.lane.b32.xlu0 %v298, 20
        %v550 = vpop.permute.xlu0 %549
        %551 = vrot.lane.b32.xlu0 %v301, 20
        %v552 = vpop.permute.xlu0 %551
        %553 = vrot.lane.b32.xlu0 %v303, 20
        %v554 = vpop.permute.xlu0 %553
        %555 = vrot.lane.b32.xlu0 %v306, 20
        %v556 = vpop.permute.xlu0 %555
        %557 = vrot.lane.b32.xlu0 %v308, 20
        %v558 = vpop.permute.xlu0 %557
        %559 = vrot.lane.b32.xlu0 %v311, 20
        %v560 = vpop.permute.xlu0 %559
        %561 = vrot.lane.b32.xlu0 %v313, 20
        %v562 = vpop.permute.xlu0 %561
        %563 = vrot.lane.b32.xlu0 %v316, 20
        %v564 = vpop.permute.xlu0 %563
        %565 = vrot.lane.b32.xlu0 %v318, 20
        %v566 = vpop.permute.xlu0 %565
        %567 = vrot.lane.b32.xlu0 %v321, 20
        %v568 = vpop.permute.xlu0 %567
        %569 = vrot.lane.b32.xlu0 %v323, 20
        %v570 = vpop.permute.xlu0 %569
        %571 = vrot.lane.b32.xlu0 %v326, 20
        %v572 = vpop.permute.xlu0 %571
        %573 = vrot.lane.b32.xlu0 %v328, 20
        %v574 = vpop.permute.xlu0 %573
        %575 = vrot.lane.b32.xlu0 %v339, 20
        %v576 = vpop.permute.xlu0 %575
        %577 = vrot.lane.b32.xlu0 %v341, 20
        %v578 = vpop.permute.xlu0 %577
        %595 = vrot.lane.b32.xlu0 %v193, 24
        %v596 = vpop.permute.xlu0 %595
        %597 = vrot.lane.b32.xlu0 %v194, 24
        %v598 = vpop.permute.xlu0 %597
        %599 = vrot.lane.b32.xlu0 %v196, 24
        %v600 = vpop.permute.xlu0 %599
        %601 = vrot.lane.b32.xlu0 %v197, 24
        %v602 = vpop.permute.xlu0 %601
        %603 = vrot.lane.b32.xlu0 %v199, 24
        %v604 = vpop.permute.xlu0 %603
        %605 = vrot.lane.b32.xlu0 %v200, 24
        %v606 = vpop.permute.xlu0 %605
        %607 = vrot.lane.b32.xlu0 %v202, 24
        %v608 = vpop.permute.xlu0 %607
        %609 = vrot.lane.b32.xlu0 %v203, 24
        %v610 = vpop.permute.xlu0 %609
        %611 = vrot.lane.b32.xlu0 %v205, 24
        %v612 = vpop.permute.xlu0 %611
        %613 = vrot.lane.b32.xlu0 %v206, 24
        %v614 = vpop.permute.xlu0 %613
        %615 = vrot.lane.b32.xlu0 %v208, 24
        %v616 = vpop.permute.xlu0 %615
        %617 = vrot.lane.b32.xlu0 %v209, 24
        %v618 = vpop.permute.xlu0 %617
        %619 = vrot.lane.b32.xlu0 %v211, 24
        %v620 = vpop.permute.xlu0 %619
        %621 = vrot.lane.b32.xlu0 %v212, 24
        %v622 = vpop.permute.xlu0 %621
        %623 = vrot.lane.b32.xlu0 %v214, 24
        %v624 = vpop.permute.xlu0 %623
        %625 = vrot.lane.b32.xlu0 %v215, 24
        %v626 = vpop.permute.xlu0 %625
        %643 = vrot.lane.b32.xlu0 %v260, 28
        %v644 = vpop.permute.xlu0 %643
        %645 = vrot.lane.b32.xlu0 %v262, 28
        %v646 = vpop.permute.xlu0 %645
        %647 = vrot.lane.b32.xlu0 %v265, 28
        %v648 = vpop.permute.xlu0 %647
        %649 = vrot.lane.b32.xlu0 %v267, 28
        %v650 = vpop.permute.xlu0 %649
        %651 = vrot.lane.b32.xlu0 %v270, 28
        %v652 = vpop.permute.xlu0 %651
        %653 = vrot.lane.b32.xlu0 %v272, 28
        %v654 = vpop.permute.xlu0 %653
        %655 = vrot.lane.b32.xlu0 %v275, 28
        %v656 = vpop.permute.xlu0 %655
        %657 = vrot.lane.b32.xlu0 %v277, 28
        %v658 = vpop.permute.xlu0 %657
        %659 = vrot.lane.b32.xlu0 %v280, 28
        %v660 = vpop.permute.xlu0 %659
        %661 = vrot.lane.b32.xlu0 %v282, 28
        %v662 = vpop.permute.xlu0 %661
        %663 = vrot.lane.b32.xlu0 %v285, 28
        %v664 = vpop.permute.xlu0 %663
        %665 = vrot.lane.b32.xlu0 %v287, 28
        %v666 = vpop.permute.xlu0 %665
        %667 = vrot.lane.b32.xlu0 %v334, 28
        %v668 = vpop.permute.xlu0 %667
        %669 = vrot.lane.b32.xlu0 %v336, 28
        %v670 = vpop.permute.xlu0 %669
        %671 = vrot.lane.b32.xlu0 %v347, 28
        %v672 = vpop.permute.xlu0 %671
        %673 = vrot.lane.b32.xlu0 %v349, 28
        %v674 = vpop.permute.xlu0 %673
        %691 = vrot.lane.b32.xlu0 %v301, 32
        %v692 = vpop.permute.xlu0 %691
        %693 = vrot.lane.b32.xlu0 %v303, 32
        %v694 = vpop.permute.xlu0 %693
        %695 = vrot.lane.b32.xlu0 %v306, 32
        %v696 = vpop.permute.xlu0 %695
        %697 = vrot.lane.b32.xlu0 %v308, 32
        %v698 = vpop.permute.xlu0 %697
        %699 = vrot.lane.b32.xlu0 %v311, 32
        %v700 = vpop.permute.xlu0 %699
        %701 = vrot.lane.b32.xlu0 %v313, 32
        %v702 = vpop.permute.xlu0 %701
        %703 = vrot.lane.b32.xlu0 %v316, 32
        %v704 = vpop.permute.xlu0 %703
        %705 = vrot.lane.b32.xlu0 %v318, 32
        %v706 = vpop.permute.xlu0 %705
        %707 = vrot.lane.b32.xlu0 %v321, 32
        %v708 = vpop.permute.xlu0 %707
        %709 = vrot.lane.b32.xlu0 %v323, 32
        %v710 = vpop.permute.xlu0 %709
        %711 = vrot.lane.b32.xlu0 %v326, 32
        %v712 = vpop.permute.xlu0 %711
        %713 = vrot.lane.b32.xlu0 %v328, 32
        %v714 = vpop.permute.xlu0 %713
        %715 = vrot.lane.b32.xlu0 %v339, 32
        %v716 = vpop.permute.xlu0 %715
        %717 = vrot.lane.b32.xlu0 %v341, 32
        %v718 = vpop.permute.xlu0 %717
        %719 = vrot.lane.b32.xlu0 %v352, 32
        %v720 = vpop.permute.xlu0 %719
        %721 = vrot.lane.b32.xlu0 %v354, 32
        %v722 = vpop.permute.xlu0 %721
        %vm739 = vcmask 31744
        %v740 = vsel %vm739, %v187, %v356
        %v741 = vsel %vm739, %v188, %v358
        %v742 = vsel %vm739, %v190, %v360
        %v743 = vsel %vm739, %v191, %v362
        %v744 = vsel %vm739, %v193, %v364
        %v745 = vsel %vm739, %v194, %v366
        %v746 = vsel %vm739, %v196, %v368
        %v747 = vsel %vm739, %v197, %v370
        %v748 = vsel %vm739, %v199, %v372
        %v749 = vsel %vm739, %v200, %v374
        %v750 = vsel %vm739, %v202, %v376
        %v751 = vsel %vm739, %v203, %v378
        %v752 = vsel %vm739, %v205, %v380
        %v753 = vsel %vm739, %v206, %v382
        %v754 = vsel %vm739, %v208, %v384
        %v755 = vsel %vm739, %v209, %v386
        %vm756 = vcmask 64512
        %v757 = vsel %vm756, %v740, %v404
        %v758 = vsel %vm756, %v741, %v406
        %v759 = vsel %vm756, %v742, %v408
        %v760 = vsel %vm756, %v743, %v410
        %v761 = vsel %vm756, %v744, %v412
        %v762 = vsel %vm756, %v745, %v414
        %v763 = vsel %vm756, %v746, %v416
        %v764 = vsel %vm756, %v747, %v418
        %v765 = vsel %vm756, %v748, %v420
        %v766 = vsel %vm756, %v749, %v422
        %v767 = vsel %vm756, %v750, %v424
        %v768 = vsel %vm756, %v751, %v426
        %v769 = vsel %vm756, %v752, %v428
        %v770 = vsel %vm756, %v753, %v430
        %v771 = vsel %vm756, %v754, %v432
        %v772 = vsel %vm756, %v755, %v434
        %vm773 = vcmask 97280
        %v774 = vsel %vm773, %v757, %v452
        %v775 = vsel %vm773, %v758, %v454
        %v776 = vsel %vm773, %v759, %v456
        %v777 = vsel %vm773, %v760, %v458
        %v778 = vsel %vm773, %v761, %v460
        %v779 = vsel %vm773, %v762, %v462
        %v780 = vsel %vm773, %v763, %v464
        %v781 = vsel %vm773, %v764, %v466
        %v782 = vsel %vm773, %v765, %v468
        %v783 = vsel %vm773, %v766, %v470
        %v784 = vsel %vm773, %v767, %v472
        %v785 = vsel %vm773, %v768, %v474
        %v786 = vsel %vm773, %v769, %v476
        %v787 = vsel %vm773, %v770, %v478
        %v788 = vsel %vm773, %v771, %v480
        %v789 = vsel %vm773, %v772, %v482
        %vm790 = vcmask 130048
        %v791 = vsel %vm790, %v774, %v500
        %v792 = vsel %vm790, %v775, %v502
        %v793 = vsel %vm790, %v776, %v504
        %v794 = vsel %vm790, %v777, %v506
        %v795 = vsel %vm790, %v778, %v508
        %v796 = vsel %vm790, %v779, %v510
        %v797 = vsel %vm790, %v780, %v512
        %v798 = vsel %vm790, %v781, %v514
        %v799 = vsel %vm790, %v782, %v516
        %v800 = vsel %vm790, %v783, %v518
        %v801 = vsel %vm790, %v784, %v520
        %v802 = vsel %vm790, %v785, %v522
        %v803 = vsel %vm790, %v786, %v524
        %v804 = vsel %vm790, %v787, %v526
        %v805 = vsel %vm790, %v788, %v528
        %v806 = vsel %vm790, %v789, %v530
        %vm807 = vcmask 162816
        %v808 = vsel %vm807, %v791, %v548
        %v809 = vsel %vm807, %v792, %v550
        %v810 = vsel %vm807, %v793, %v552
        %v811 = vsel %vm807, %v794, %v554
        %v812 = vsel %vm807, %v795, %v556
        %v813 = vsel %vm807, %v796, %v558
        %v814 = vsel %vm807, %v797, %v560
        %v815 = vsel %vm807, %v798, %v562
        %v816 = vsel %vm807, %v799, %v564
        %v817 = vsel %vm807, %v800, %v566
        %v818 = vsel %vm807, %v801, %v568
        %v819 = vsel %vm807, %v802, %v570
        %v820 = vsel %vm807, %v803, %v572
        %v821 = vsel %vm807, %v804, %v574
        %v822 = vsel %vm807, %v805, %v576
        %v823 = vsel %vm807, %v806, %v578
        %vm824 = vcmask 195584
        %v825 = vsel %vm824, %v808, %v596
        %v826 = vsel %vm824, %v809, %v598
        %v827 = vsel %vm824, %v810, %v600
        %v828 = vsel %vm824, %v811, %v602
        %v829 = vsel %vm824, %v812, %v604
        %v830 = vsel %vm824, %v813, %v606
        %v831 = vsel %vm824, %v814, %v608
        %v832 = vsel %vm824, %v815, %v610
        %v833 = vsel %vm824, %v816, %v612
        %v834 = vsel %vm824, %v817, %v614
        %v835 = vsel %vm824, %v818, %v616
        %v836 = vsel %vm824, %v819, %v618
        %v837 = vsel %vm824, %v820, %v620
        %v838 = vsel %vm824, %v821, %v622
        %v839 = vsel %vm824, %v822, %v624
        %v840 = vsel %vm824, %v823, %v626
        %vm841 = vcmask 228352
        %v842 = vsel %vm841, %v825, %v644
        %v843 = vsel %vm841, %v826, %v646
        %v844 = vsel %vm841, %v827, %v648
        %v845 = vsel %vm841, %v828, %v650
        %v846 = vsel %vm841, %v829, %v652
        %v847 = vsel %vm841, %v830, %v654
        %v848 = vsel %vm841, %v831, %v656
        %v849 = vsel %vm841, %v832, %v658
        %v850 = vsel %vm841, %v833, %v660
        %v851 = vsel %vm841, %v834, %v662
        %v852 = vsel %vm841, %v835, %v664
        %v853 = vsel %vm841, %v836, %v666
        %v854 = vsel %vm841, %v837, %v668
        %v855 = vsel %vm841, %v838, %v670
        %v856 = vsel %vm841, %v839, %v672
        %v857 = vsel %vm841, %v840, %v674
        %vm858 = vcmask 261120
        %v859 = vsel %vm858, %v842, %v692
        %v860 = vsel %vm858, %v843, %v694
        %v861 = vsel %vm858, %v844, %v696
        %v862 = vsel %vm858, %v845, %v698
        %v863 = vsel %vm858, %v846, %v700
        %v864 = vsel %vm858, %v847, %v702
        %v865 = vsel %vm858, %v848, %v704
        %v866 = vsel %vm858, %v849, %v706
        %v867 = vsel %vm858, %v850, %v708
        %v868 = vsel %vm858, %v851, %v710
        %v869 = vsel %vm858, %v852, %v712
        %v870 = vsel %vm858, %v853, %v714
        %v871 = vsel %vm858, %v854, %v716
        %v872 = vsel %vm858, %v855, %v718
        %v873 = vsel %vm858, %v856, %v720
        %v874 = vsel %vm858, %v857, %v722
        %v876 = vlaneseq
        %v877 = vshrl.u32 %v876, 7
        %v878 = vsub.s32 0, %v877
        %v879 = vrot.slane %v222, %v878
        %vm881 = vcmask 293888
        %v883 = vsel %vm881, %v859, 0
        %v886 = vsel %vm881, %v860, 0
        %v889 = vsel %vm881, %v861, 0
        %v892 = vsel %vm881, %v862, 0
        %v895 = vsel %vm881, %v863, 0
        %v898 = vsel %vm881, %v864, 0
        %v901 = vsel %vm881, %v865, 0
        %v904 = vsel %vm881, %v866, 0
        %v907 = vsel %vm881, %v867, 0
        %v910 = vsel %vm881, %v868, 0
        %v913 = vsel %vm881, %v869, 0
        %v916 = vsel %vm881, %v870, 0
        %v919 = vsel %vm881, %v871, 0
        %v922 = vsel %vm881, %v872, 0
        %v925 = vsel %vm881, %v873, 0
        %v928 = vsel %vm881, %v874, 0
        %vm930 = vcmask 1043456
        %v932 = vsel %vm930, %v221, 0
        %934 = vmatprep.subr.mxu0 0.0
        %935 = vmatpush1.msra.mxu0 %v217
        %936 = vmatprep.subr.mxu0 0.0
        %937 = vmatpush1.msra.mxu0 %v218
        %938 = vmatprep.subr.mxu0 0.0
        %939 = vmatpush1.msra.mxu0 %v219
        %940 = vmatprep.subr.mxu0 0.0
        %941 = vmatpush1.msra.mxu0 %v220
        %942 = vmatprep.subr.mxu0 0.0
        %943 = vmatpush1.msra.mxu0 %v932
        %944 = vmatprep.subr.mxu0 0.0
        %945 = vmatpush1.msra.mxu0 0.0
        %946 = vmatprep.subr.mxu0 0.0
        %947 = vmatpush1.msra.mxu0 0.0
        %948 = vmatprep.subr.mxu0 0.0
        %949 = vmatpush1.msra.mxu0 0.0
        %950 = vmatprep.subr.mxu0 0.0
        %951 = vmatpush1.msra.mxu0 0.0
        %952 = vmatprep.subr.mxu0 0.0
        %953 = vmatpush1.msra.mxu0 0.0
        %954 = vmatprep.subr.mxu0 0.0
        %955 = vmatpush1.msra.mxu0 0.0
        %956 = vmatprep.subr.mxu0 0.0
        %957 = vmatpush1.msra.mxu0 0.0
        %958 = vmatprep.subr.mxu0 0.0
        %959 = vmatpush1.msra.mxu0 0.0
        %960 = vmatprep.subr.mxu0 0.0
        %961 = vmatpush1.msra.mxu0 0.0
        %962 = vmatprep.subr.mxu0 0.0
        %963 = vmatpush1.msra.mxu0 0.0
        %964 = vmatprep.subr.mxu0 0.0
        %965 = vmatpush1.msra.mxu0 0.0
        %966 = vmatprep.subr.mxu0 0.0
        %967 = vmatpush1.msra.mxu0 0.0
        %968 = vmatprep.subr.mxu0 0.0
        %969 = vmatpush1.msra.mxu0 0.0
        %970 = vmatprep.subr.mxu0 0.0
        %971 = vmatpush1.msra.mxu0 0.0
        %972 = vmatprep.subr.mxu0 0.0
        %973 = vmatpush1.msra.mxu0 0.0
        %974 = vmatprep.subr.mxu0 0.0
        %975 = vmatpush1.msra.mxu0 0.0
        %976 = vmatprep.subr.mxu0 0.0
        %977 = vmatpush1.msra.mxu0 0.0
        %978 = vmatprep.subr.mxu0 0.0
        %979 = vmatpush1.msra.mxu0 0.0
        %980 = vmatprep.subr.mxu0 0.0
        %981 = vmatpush1.msra.mxu0 0.0
        %982 = vmatprep.subr.mxu0 0.0
        %983 = vmatpush1.msra.mxu0 0.0
        %984 = vmatprep.subr.mxu0 0.0
        %985 = vmatpush1.msra.mxu0 0.0
        %986 = vmatprep.subr.mxu0 0.0
        %987 = vmatpush1.msra.mxu0 0.0
        %988 = vmatprep.subr.mxu0 0.0
        %989 = vmatpush1.msra.mxu0 0.0
        %990 = vmatprep.subr.mxu0 0.0
        %991 = vmatpush1.msra.mxu0 0.0
        %992 = vmatprep.subr.mxu0 0.0
        %993 = vmatpush1.msra.mxu0 0.0
        %994 = vmatprep.subr.mxu0 0.0
        %995 = vmatpush1.msra.mxu0 0.0
        %996 = vmatprep.subr.mxu0 0.0
        %997 = vmatpush1.msra.mxu0 0.0
        %998 = vmatprep.mubr.f32.mxu0 0.0
        %999 = vmatmul.mubr.f32.gmra.mrb[0].mxu0 %v883
        %v1000 = vpop.f32.mrb[0].mxu0
        %v1001 = vadd.f32 %v879, %v1000
        %v1002 = vpop.f32.mrb[0].mxu0
        %1003 = vmatprep.mubr.f32.mxu0 0.0
        %1004 = vmatmul.mubr.f32.gmra.mrb[0].mxu0 %v886
        %v1005 = vpop.f32.mrb[0].mxu0
        %v1006 = vadd.f32 %v879, %v1005
        %v1007 = vpop.f32.mrb[0].mxu0
        %1008 = vmatprep.mubr.f32.mxu0 0.0
        %1009 = vmatmul.mubr.f32.gmra.mrb[0].mxu0 %v889
        %v1010 = vpop.f32.mrb[0].mxu0
        %v1011 = vadd.f32 %v879, %v1010
        %v1012 = vpop.f32.mrb[0].mxu0
        %1013 = vmatprep.mubr.f32.mxu0 0.0
        %1014 = vmatmul.mubr.f32.gmra.mrb[0].mxu0 %v892
        %v1015 = vpop.f32.mrb[0].mxu0
        %v1016 = vadd.f32 %v879, %v1015
        %v1017 = vpop.f32.mrb[0].mxu0
        %1018 = vmatprep.mubr.f32.mxu0 0.0
        %1019 = vmatmul.mubr.f32.gmra.mrb[0].mxu0 %v895
        %v1020 = vpop.f32.mrb[0].mxu0
        %v1021 = vadd.f32 %v879, %v1020
        %v1022 = vpop.f32.mrb[0].mxu0
        %1023 = vmatprep.mubr.f32.mxu0 0.0
        %1024 = vmatmul.mubr.f32.gmra.mrb[0].mxu0 %v898
        %v1025 = vpop.f32.mrb[0].mxu0
        %v1026 = vadd.f32 %v879, %v1025
        %v1027 = vpop.f32.mrb[0].mxu0
        %1028 = vmatprep.mubr.f32.mxu0 0.0
        %1029 = vmatmul.mubr.f32.gmra.mrb[0].mxu0 %v901
        %v1030 = vpop.f32.mrb[0].mxu0
        %v1031 = vadd.f32 %v879, %v1030
        %v1032 = vpop.f32.mrb[0].mxu0
        %1033 = vmatprep.mubr.f32.mxu0 0.0
        %1034 = vmatmul.mubr.f32.gmra.mrb[0].mxu0 %v904
        %v1035 = vpop.f32.mrb[0].mxu0
        %v1036 = vadd.f32 %v879, %v1035
        %v1037 = vpop.f32.mrb[0].mxu0
        %1038 = vmatprep.mubr.f32.mxu0 0.0
        %1039 = vmatmul.mubr.f32.gmra.mrb[0].mxu0 %v907
        %v1040 = vpop.f32.mrb[0].mxu0
        %v1041 = vadd.f32 %v879, %v1040
        %v1042 = vpop.f32.mrb[0].mxu0
        %1043 = vmatprep.mubr.f32.mxu0 0.0
        %1044 = vmatmul.mubr.f32.gmra.mrb[0].mxu0 %v910
        %v1045 = vpop.f32.mrb[0].mxu0
        %v1046 = vadd.f32 %v879, %v1045
        %v1047 = vpop.f32.mrb[0].mxu0
        %1048 = vmatprep.mubr.f32.mxu0 0.0
        %1049 = vmatmul.mubr.f32.gmra.mrb[0].mxu0 %v913
        %v1050 = vpop.f32.mrb[0].mxu0
        %v1051 = vadd.f32 %v879, %v1050
        %v1052 = vpop.f32.mrb[0].mxu0
        %1053 = vmatprep.mubr.f32.mxu0 0.0
        %1054 = vmatmul.mubr.f32.gmra.mrb[0].mxu0 %v916
        %v1055 = vpop.f32.mrb[0].mxu0
        %v1056 = vadd.f32 %v879, %v1055
        %v1057 = vpop.f32.mrb[0].mxu0
        %1058 = vmatprep.mubr.f32.mxu0 0.0
        %1059 = vmatmul.mubr.f32.gmra.mrb[0].mxu0 %v919
        %v1060 = vpop.f32.mrb[0].mxu0
        %v1061 = vadd.f32 %v879, %v1060
        %v1062 = vpop.f32.mrb[0].mxu0
        %1063 = vmatprep.mubr.f32.mxu0 0.0
        %1064 = vmatmul.mubr.f32.gmra.mrb[0].mxu0 %v922
        %v1065 = vpop.f32.mrb[0].mxu0
        %v1066 = vadd.f32 %v879, %v1065
        %v1067 = vpop.f32.mrb[0].mxu0
        %1068 = vmatprep.mubr.f32.mxu0 0.0
        %1069 = vmatmul.mubr.f32.gmra.mrb[0].mxu0 %v925
        %v1070 = vpop.f32.mrb[0].mxu0
        %v1071 = vadd.f32 %v879, %v1070
        %v1072 = vpop.f32.mrb[0].mxu0
        %1073 = vmatprep.mubr.f32.mxu0 0.0
        %1074 = vmatmul.mubr.f32.gmra.mrb[0].mxu0 %v928
        %v1075 = vpop.f32.mrb[0].mxu0
        %v1076 = vadd.f32 %v879, %v1075
        %v1077 = vpop.f32.mrb[0].mxu0
        %1078 = vdwg.mxu0
        %v1079 = vmax.f32 %v1001, 0.0
        %v1080 = vmax.f32 %v1006, 0.0
        %v1081 = vmax.f32 %v1011, 0.0
        %v1082 = vmax.f32 %v1016, 0.0
        %v1083 = vmax.f32 %v1021, 0.0
        %v1084 = vmax.f32 %v1026, 0.0
        %v1085 = vmax.f32 %v1031, 0.0
        %v1086 = vmax.f32 %v1036, 0.0
        %v1087 = vmax.f32 %v1041, 0.0
        %v1088 = vmax.f32 %v1046, 0.0
        %v1089 = vmax.f32 %v1051, 0.0
        %v1090 = vmax.f32 %v1056, 0.0
        %v1091 = vmax.f32 %v1061, 0.0
        %v1092 = vmax.f32 %v1066, 0.0
        %v1093 = vmax.f32 %v1071, 0.0
        %v1094 = vmax.f32 %v1076, 0.0
        %1095 = vst.msk [vmem:[%s177] sm:$0xff] %vm858, %v1079
        %1096 = vst.msk [vmem:[%s177 + $0x8] sm:$0xff] %vm858, %v1080
        %1097 = vst.msk [vmem:[%s177 + $0x10] sm:$0xff] %vm858, %v1081
        %1098 = vst.msk [vmem:[%s177 + $0x18] sm:$0xff] %vm858, %v1082
        %1099 = vst.msk [vmem:[%s177 + $0x20] sm:$0xff] %vm858, %v1083
        %1100 = vst.msk [vmem:[%s177 + $0x28] sm:$0xff] %vm858, %v1084
        %1101 = vst.msk [vmem:[%s177 + $0x30] sm:$0xff] %vm858, %v1085
        %1102 = vst.msk [vmem:[%s177 + $0x38] sm:$0xff] %vm858, %v1086
        %1103 = vst.msk [vmem:[%s177 + $0x40] sm:$0xff] %vm858, %v1087
        %1104 = vst.msk [vmem:[%s177 + $0x48] sm:$0xff] %vm858, %v1088
        %1105 = vst.msk [vmem:[%s177 + $0x50] sm:$0xff] %vm858, %v1089
        %1106 = vst.msk [vmem:[%s177 + $0x58] sm:$0xff] %vm858, %v1090
        %1107 = vst.msk [vmem:[%s177 + $0x60] sm:$0xff] %vm858, %v1091
        %1108 = vst.msk [vmem:[%s177 + $0x68] sm:$0xff] %vm858, %v1092
        %1109 = vst.msk [vmem:[%s177 + $0x70] sm:$0xff] %vm858, %v1093
        %1110 = vst.msk [vmem:[%s177 + $0x78] sm:$0xff] %vm858, %v1094
        %s1111 = sand.u32 %s107, 1
        %s1112 = scalar_lea.sflag [#allocation3], %s1111
        %s1113 = sand.u32 %s107, 1
        %s1114 = smul.addr %s1113, 128
        %s1115 = scalar_lea.vmem [#allocation2], %s1114
        // Predicated region
        $region33: #{m_conv_forward.1} parent=31 // pred_check
          %p1116 = pneg %p117
        $region34: #{m_conv_forward.1} parent=31 // pred_check_branch
          %1118 = sbr.rel (%p1116) target = $region36
        $region35: #{m_conv_forward.1} parent=31 // pred_region
          %s1119 = smul.u32 8, %s22
          %s1121 = ssub.s32 2048, 2048
          %1122 = vsyncadd %s1112, %s1121
          %s1123 = smul.addr %s1119, 2
          %s1124 = smul.addr %s21, 32
          %s1125 = sadd.s32 %s1123, %s1124
          %s1126 = smul.addr %s1125, 128
          %s1127 = scalar_lea.hbm %s3, %s1126
          %s1128 = sshll.u32 %s1115, 4
          %s1129 = int_to_ptr.vmem [resolvable:$true] %s1128
          %1134 = dma.vmem_to_hbm [thread:$0]  %s1129, 2048, %s1127, %s1112, 128, 128, 8
        $region36: #{m_conv_forward.1} parent=31 // pred_fallthru
          _
      $region32: #{m_conv_forward.1} parent=5 // pred_fallthru
        _
      %p1135 = scmp.le.s32.totalorder 2, %s12
      // Predicated region
      $region37: #{m_conv_forward.1} parent=5 // pred_check
        %p1136 = pneg %p1135
      $region38: #{m_conv_forward.1} parent=5 // pred_check_branch
        %1138 = sbr.rel (%p1136) target = $region40
      $region39: #{m_conv_forward.1} parent=5 // pred_region
        %s1139 = ssub.s32 %s12, 2
        // Predicated region
        $region41: #{m_conv_forward.1} parent=39 // pred_check
          %p1140 = pneg %p123
        $region42: #{m_conv_forward.1} parent=39 // pred_check_branch
          %1142 = sbr.rel (%p1140) target = $region44
        $region43: #{m_conv_forward.1} parent=39 // pred_region
          %s1143 = sand.u32 %s108, 1
          %s1144 = scalar_lea.sflag [#allocation3], %s1143
          %s1145 = sand.u32 %s108, 1
          %s1146 = smul.addr %s1145, 128
          %s1147 = scalar_lea.vmem [#allocation2], %s1146
          %1148 = dma.done %s1144, 2048
        $region44: #{m_conv_forward.1} parent=39 // pred_fallthru
          _
      $region40: #{m_conv_forward.1} parent=5 // pred_fallthru
        _
    $region6: #{m_conv_forward.1} parent=1 // loop_footer
      %s16 = sadd.s32 1, %s12
    $region7: #{m_conv_forward.1} parent=1 // loop_footer_branch
      %11 = sbr.rel target = $region3
    $region8: #{m_conv_forward.1} parent=1 // loop_exit
      _
    %1149 = vsyncpa [#allocation3], 1
    %s1150 = scalar_lea.sflag [#allocation3], 1
    %1151 = vsyncpa %s1150, 1

</llo_original>
